<compile_context>
chip_gen: v5e
topology: v5e:2x2
jax: 0.10.0
libtpu: 0.0.40
codegen_flags: <defaults>
</compile_context>

<pallas_src>
import functools

import jax
import jax.numpy as jnp
import numpy as np
from jax.experimental import pallas as pl
from jax.experimental.pallas import tpu as pltpu


# ----------------------- synthetic backbone / neck kernels -----------------------

def _conv_relu_kernel(p_ref, w_ref, b_ref, o_ref):
    # p: (row_tile, Cin*9), w: (Cin*9, Cout), b: (1, Cout) -> o: (row_tile, Cout)
    y = jnp.dot(p_ref[...], w_ref[...],
                preferred_element_type=jnp.float32,
                precision=jax.lax.Precision.DEFAULT)
    o_ref[...] = jnp.maximum(y + b_ref[...], 0.0)


def _pool_linear_kernel(x_ref, w_ref, o_ref):
    # x: (B, H*W, Cout) -> global average pool -> (B, Cout) -> @ (Cout, feat_dim)
    pooled = jnp.mean(x_ref[...], axis=1)
    o_ref[...] = jnp.dot(pooled, w_ref[...],
                         preferred_element_type=jnp.float32,
                         precision=jax.lax.Precision.DEFAULT)


def im2col_nchw(x, kh=3, kw=3, pad=1):
    """NCHW -> (B*H*W, C*kh*kw) patches (stride 1, 'same' padding)."""
    B, C, H, W = x.shape
    xp = jnp.pad(x, ((0, 0), (0, 0), (pad, pad), (pad, pad)))
    cols = []
    for i in range(kh):
        for j in range(kw):
            cols.append(xp[:, :, i:i + H, j:j + W])
    patches = jnp.stack(cols, axis=2)                   # (B, C, kh*kw, H, W)
    patches = jnp.transpose(patches, (0, 3, 4, 1, 2))   # (B, H, W, C, kh*kw)
    return patches.reshape(B * H * W, C * kh * kw)


def conv_relu(patches, w_mat, b_conv, *, row_tile=512):
    rows, K = patches.shape
    Cout = w_mat.shape[1]
    assert rows % row_tile == 0
    return pl.pallas_call(
        _conv_relu_kernel,
        out_shape=jax.ShapeDtypeStruct((rows, Cout), jnp.float32),
        grid=(rows // row_tile,),
        in_specs=[
            pl.BlockSpec((row_tile, K), lambda i: (i, 0)),
            pl.BlockSpec((K, Cout), lambda i: (0, 0)),
            pl.BlockSpec((1, Cout), lambda i: (0, 0)),
        ],
        out_specs=pl.BlockSpec((row_tile, Cout), lambda i: (i, 0)),
        compiler_params=pltpu.CompilerParams(
            dimension_semantics=("parallel",)),
    )(patches, w_mat, b_conv)


def pool_linear(feat, w_neck):
    B, HW, Cout = feat.shape
    feat_dim = w_neck.shape[1]
    return pl.pallas_call(
        _pool_linear_kernel,
        out_shape=jax.ShapeDtypeStruct((B, feat_dim), jnp.float32),
    )(feat, w_neck)


# ------------------------- SpatialCL similarity kernel ---------------------------

def _spatialcl_kernel(q_ref, mem_ref, coords_ref, cbank_ref, bag_ref, bagbank_ref,
                      idx_ref, d_ref, s_ref, mask_ref, spos_ref, plog_ref,
                      *, inv_T, thr_sq):
    j = pl.program_id(0)
    tn = mem_ref.shape[0]

    # --- L2 normalize q (torch F.normalize, eps=1e-12). Grid-invariant; at the
    #     default tile size the grid has a single step so this runs once. ---
    q = q_ref[...]                                             # (B, C)
    norm = jnp.sqrt(jnp.sum(q * q, axis=1, keepdims=True))
    qn = q / jnp.maximum(norm, 1e-12)

    # --- d_all = einsum('bc,nc->bn', q, memory)  (no .T materialized) ---
    d = jax.lax.dot_general(
        qn, mem_ref[...],
        dimension_numbers=(((1,), (1,)), ((), ())),
        preferred_element_type=jnp.float32,
        precision=jax.lax.Precision.HIGH)                      # (B, tn)
    s = jnp.exp(d * inv_T)

    # --- _spatial_ir: same-bag & (0 < cdist < threshold), squared distances ---
    xb = cbank_ref[0:1, :]                                     # (1, tn)
    yb = cbank_ref[1:2, :]                                     # (1, tn)
    dx = coords_ref[:, 0:1] - xb                               # (B, tn)
    dy = coords_ref[:, 1:2] - yb
    d2 = dx * dx + dy * dy
    same_bag = bag_ref[...] == bagbank_ref[...]                # (B,1)==(1,tn) -> (B,tn)
    pos_idx = same_bag & (d2 < thr_sq) & (d2 > 0.0)

    d_ref[...] = d
    s_ref[...] = s
    mask_ref[...] = pos_idx.astype(jnp.int8)

    # --- per-tile partial reductions, one (B, 1) column per tile; summed in the
    #     wrapper, so tiles are fully independent ("parallel" grid axis). ---
    spos_ref[...] = jnp.sum(jnp.where(pos_idx, s, 0.0), axis=1, keepdims=True)

    # pos_logits[b] = einsum('nc,nc->n', memory[idx], q)[b] == d_all[b, idx[b]]
    n_global = j * tn + jax.lax.broadcasted_iota(jnp.int32, (1, tn), 1)
    hit = n_global == idx_ref[...]                             # (B, tn)
    plog_ref[...] = jnp.sum(jnp.where(hit, d, 0.0), axis=1, keepdims=True)


def spatialcl_similarity(q_raw, memory, coords, coords_bank_t, bag_idx_col,
                         bag_idxs_row, idx_col, *, temperature, dis_threshold,
                         tn=None):
    B, C = q_raw.shape
    N, _ = memory.shape
    if tn is None:
        # Whole bank in one tile when it comfortably fits VMEM (double-buffered
        # mem tile = 2*tn*C*4 B + 2*3*B*tn*4 B of output blocks); for big banks
        # pick the largest multiple of 256 that fits (256-wide MXU on v6e/v7x),
        # and the "parallel" grid axis lets v7x shard tiles across both cores.
        tn = N if N <= 4096 else 2048
    assert N % tn == 0 and tn % 128 == 0
    nt = N // tn

    kernel = functools.partial(_spatialcl_kernel,
                               inv_T=1.0 / float(temperature),
                               thr_sq=float(dis_threshold) ** 2)
    out_shape = (
        jax.ShapeDtypeStruct((B, N), jnp.float32),   # d_all
        jax.ShapeDtypeStruct((B, N), jnp.float32),   # s_all
        jax.ShapeDtypeStruct((B, N), jnp.int8),      # spatial_pos_idx
        jax.ShapeDtypeStruct((B, nt), jnp.float32),  # s_pos_spatial partials
        jax.ShapeDtypeStruct((B, nt), jnp.float32),  # pos_logits partials
    )
    in_specs = [
        pl.BlockSpec((B, C), lambda j: (0, 0)),      # q_raw
        pl.BlockSpec((tn, C), lambda j: (j, 0)),     # memory bank tile
        pl.BlockSpec((B, 2), lambda j: (0, 0)),      # batch coords
        pl.BlockSpec((2, tn), lambda j: (0, j)),     # coords bank (transposed)
        pl.BlockSpec((B, 1), lambda j: (0, 0)),      # batch bag ids
        pl.BlockSpec((1, tn), lambda j: (0, j)),     # bag id bank (row)
        pl.BlockSpec((B, 1), lambda j: (0, 0)),      # batch sample idx
    ]
    out_specs = [
        pl.BlockSpec((B, tn), lambda j: (0, j)),
        pl.BlockSpec((B, tn), lambda j: (0, j)),
        pl.BlockSpec((B, tn), lambda j: (0, j)),
        pl.BlockSpec((B, 1), lambda j: (0, j)),
        pl.BlockSpec((B, 1), lambda j: (0, j)),
    ]
    d_all, s_all, mask, spos_part, plog_part = pl.pallas_call(
        kernel,
        out_shape=out_shape,
        grid_spec=pltpu.PrefetchScalarGridSpec(
            num_scalar_prefetch=0,
            grid=(nt,),
            in_specs=in_specs,
            out_specs=out_specs,
        ),
        compiler_params=pltpu.CompilerParams(
            dimension_semantics=("parallel",)),     # independent bank tiles
    )(q_raw, memory, coords, coords_bank_t, bag_idx_col, bag_idxs_row, idx_col)

    # Reduce the per-tile partial columns (single column at the default tn).
    s_pos_spatial = jnp.sum(spos_part, axis=1, keepdims=True)
    pos_logits = jnp.sum(plog_part, axis=1, keepdims=True)
    return d_all, s_all, mask, s_pos_spatial, pos_logits


# --------------------------------------- main ------------------------------------

if __name__ == "__main__":
    key = jax.random.PRNGKey(0)
    B, Cin, H, W = 8, 4, 16, 16        # img: NCHW like the PyTorch module
    Cout, feat_dim = 128, 128          # lane-dense synthetic backbone / neck widths
    N_mem = 512                        # memory bank size (ndata)
    T = 0.07                           # head temperature
    dis_threshold = 2.0

    ks = jax.random.split(key, 6)
    img = jax.random.normal(ks[0], (B, Cin, H, W), jnp.float32)
    w_conv = jax.random.normal(ks[1], (Cout, Cin, 3, 3), jnp.float32) * 0.1
    b_conv = jnp.zeros((1, Cout), jnp.float32)
    w_neck = jax.random.normal(ks[2], (Cout, feat_dim), jnp.float32) * 0.1

    # deterministic memory bank (L2-normalized features), bag ids and coords bank
    memory = jax.random.normal(ks[3], (N_mem, feat_dim), jnp.float32)
    memory = memory / jnp.linalg.norm(memory, axis=1, keepdims=True)
    bag_idxs = jax.random.randint(ks[4], (N_mem,), 0, 16, jnp.int32)
    coords_bank = jax.random.randint(ks[5], (N_mem, 2), 0, 8,
                                     jnp.int32).astype(jnp.float32)

    # batch metadata: indices into the bank (so positives exist)
    idx = (jnp.arange(B, dtype=jnp.int32) * 37) % N_mem
    bag_idx = bag_idxs[idx]
    x_coord = coords_bank[idx, 0]
    y_coord = coords_bank[idx, 1]

    # --- backbone: conv3x3 + ReLU as a row-tiled Pallas im2col matmul ---
    # TODO(synk): for real backbone sizes, fuse patch extraction into the conv
    #             kernel (or use lax.conv) instead of materializing the 9x
    #             im2col expansion in HBM; negligible at this toy shape.
    patches = im2col_nchw(img)                                  # (B*H*W, Cin*9)
    w_mat = jnp.transpose(w_conv.reshape(Cout, Cin * 9))        # (Cin*9, Cout)
    feat = conv_relu(patches, w_mat, b_conv, row_tile=512)      # (B*H*W, Cout)
    feat = feat.reshape(B, H * W, Cout)

    # --- neck: global average pool + linear (Pallas) ---
    q_raw = pool_linear(feat, w_neck)                           # (B, feat_dim)

    # --- SpatialCL similarity / spatial-IR hot path (Pallas) ---
    coords = jnp.stack([x_coord, y_coord], axis=1)              # (B, 2)
    d_all, s_all, spatial_pos_idx, s_pos_spatial, pos_logits = spatialcl_similarity(
        q_raw, memory, coords, coords_bank.T,
        bag_idx[:, None], bag_idxs[None, :], idx[:, None],
        temperature=T, dis_threshold=dis_threshold)
    jax.block_until_ready((d_all, s_all, spatial_pos_idx, s_pos_spatial, pos_logits))

    # --- pure-JAX reference check of the kernel semantics ---
    qn = q_raw / jnp.maximum(jnp.linalg.norm(q_raw, axis=1, keepdims=True), 1e-12)
    d_ref = jnp.einsum('bc,nc->bn', qn, memory,
                       precision=jax.lax.Precision.HIGHEST)
    s_ref = jnp.exp(d_ref / T)
    dist_ref = jnp.sqrt(jnp.sum(
        (coords[:, None, :] - coords_bank[None, :, :]) ** 2, axis=-1))
    mask_ref = ((bag_idx[:, None] == bag_idxs[None, :])
                & (dist_ref < dis_threshold) & (dist_ref > 0.0))
    spos_ref = jnp.sum(jnp.where(mask_ref, s_ref, 0.0), axis=1)
    plog_ref = d_ref[jnp.arange(B), idx]

    np.testing.assert_allclose(np.asarray(d_all), np.asarray(d_ref),
                               rtol=5e-3, atol=5e-3)
    np.testing.assert_allclose(np.asarray(s_all), np.asarray(s_ref),
                               rtol=2e-2, atol=1e-2)
    np.testing.assert_array_equal(np.asarray(spatial_pos_idx),
                                  np.asarray(mask_ref).astype(np.int8))
    np.testing.assert_allclose(np.asarray(s_pos_spatial[:, 0]), np.asarray(spos_ref),
                               rtol=2e-2, atol=1e-2)
    np.testing.assert_allclose(np.asarray(pos_logits[:, 0]), np.asarray(plog_ref),
                               rtol=5e-3, atol=5e-3)

    print("KERNEL_OK")
</pallas_src>

<mosaic_0001>
module attributes {stable_mosaic.version = 11 : i64} {
  func.func @_conv_relu_kernel(%arg0: i32, %arg1: memref<512x36xf32, #tpu.memory_space<vmem>>, %arg2: memref<36x128xf32, #tpu.memory_space<vmem>>, %arg3: memref<1x128xf32, #tpu.memory_space<vmem>>, %arg4: memref<512x128xf32, #tpu.memory_space<vmem>>) attributes {dimension_semantics = [#tpu.dimension_semantics<parallel>], iteration_bounds = array<i64: 4>, scalar_prefetch = 0 : i64, scratch_operands = 0 : i64, tpu.core_type = #tpu.core_type<tc>, window_params = [{transform_indices = @transform_0, window_bounds = array<i64: 512, 36>}, {pipeline_mode = #tpu.pipeline_mode<synchronous>, transform_indices = @transform_1, window_bounds = array<i64: 36, 128>}, {pipeline_mode = #tpu.pipeline_mode<synchronous>, transform_indices = @transform_2, window_bounds = array<i64: 1, 128>}, {transform_indices = @transform_3, window_bounds = array<i64: 512, 128>}]} {
    %c0 = arith.constant 0 : index
    %c0_0 = arith.constant 0 : index
    %0 = vector.load %arg1[%c0, %c0_0] : memref<512x36xf32, #tpu.memory_space<vmem>>, vector<512x36xf32>
    %c0_1 = arith.constant 0 : index
    %c0_2 = arith.constant 0 : index
    %1 = vector.load %arg2[%c0_1, %c0_2] : memref<36x128xf32, #tpu.memory_space<vmem>>, vector<36x128xf32>
    %cst = arith.constant dense<0.000000e+00> : vector<512x128xf32>
    %2 = tpu.matmul %0, %1, %cst {dimension_numbers = #tpu.dot_dimension_numbers<[1], [0], [0], [1], [0, 0, 1, 1], [], []>} : vector<512x36xf32>, vector<36x128xf32>, vector<512x128xf32> -> vector<512x128xf32>
    %c0_3 = arith.constant 0 : index
    %c0_4 = arith.constant 0 : index
    %3 = vector.load %arg3[%c0_3, %c0_4] : memref<1x128xf32, #tpu.memory_space<vmem>>, vector<1x128xf32>
    %4 = vector.broadcast %3 : vector<1x128xf32> to vector<512x128xf32>
    %5 = arith.addf %2, %4 : vector<512x128xf32>
    %cst_5 = arith.constant 0.000000e+00 : f32
    %6 = vector.broadcast %cst_5 : f32 to vector<512x128xf32>
    %7 = arith.maximumf %5, %6 : vector<512x128xf32>
    %c0_6 = arith.constant 0 : index
    %c0_7 = arith.constant 0 : index
    %8 = vector.load %arg4[%c0_6, %c0_7] : memref<512x128xf32, #tpu.memory_space<vmem>>, vector<512x128xf32>
    tpu.vector_store %arg4[%c0_6, %c0_7], %7 {strides = array<i32>} : memref<512x128xf32, #tpu.memory_space<vmem>>, vector<512x128xf32>,
    return
  }
  func.func @transform_0(%arg0: i32) -> (i32, i32) {
    %c0_i32 = arith.constant 0 : i32
    %c0_i32_0 = arith.constant 0 : i32
    return %arg0, %c0_i32 : i32, i32
  }
  func.func @transform_1(%arg0: i32) -> (i32, i32) {
    %c0_i32 = arith.constant 0 : i32
    %c0_i32_0 = arith.constant 0 : i32
    %c0_i32_1 = arith.constant 0 : i32
    return %c0_i32, %c0_i32_0 : i32, i32
  }
  func.func @transform_2(%arg0: i32) -> (i32, i32) {
    %c0_i32 = arith.constant 0 : i32
    %c0_i32_0 = arith.constant 0 : i32
    %c0_i32_1 = arith.constant 0 : i32
    return %c0_i32, %c0_i32_0 : i32, i32
  }
  func.func @transform_3(%arg0: i32) -> (i32, i32) {
    %c0_i32 = arith.constant 0 : i32
    %c0_i32_0 = arith.constant 0 : i32
    return %arg0, %c0_i32 : i32, i32
  }
}

</mosaic_0001>

<llo_original>
// kernel: tpu_custom_call.1
$region0: #{tpu_custom_call.1}
  #allocation0 [shape = 'u32[]', space=smem, size = 0x4, offset = 0x4, fixed_abs, tag = 'smem constant byte address 0x4 - core index']
  #allocation1 [shape = 'u32[72,128]{1,0:T(1,128)}', space=vmem, size = 0x9000, scoped, tag = 'internal scratch']
  %s0 = inlined_call_operand.vmem [shape: f32[2048,36], index: 0, kind: input, shape index: {}]
  %s1 = inlined_call_operand.vmem [shape: f32[36,128], index: 1, kind: input, shape index: {}]
  %s2 = inlined_call_operand.vmem [shape: f32[1,128], index: 2, kind: input, shape index: {}]
  %s3 = inlined_call_operand.hbm [shape: f32[2048,128], index: 3, kind: output, shape index: {}]
  %s4 = sld [smem:[#allocation0]]
  $region45: #{tpu_custom_call.1} parent=0
    _
  %s6 = ssub.s32 1, %s4
  %s7 = scalar_select 0, %s6, %s4
  $region1: #{tpu_custom_call.1} parent=0
    #allocation2 [shape = 'u8[524288]{0}', space=vmem, size = 0x80000, scoped, tag = 'output window, operand 0']
    #allocation3 [shape = 's32[2]{0}', space=sflag, size = 0x8, scoped, tag = 'scoped memory for tpu_custom_call.1']
    %8 = vsyncpa [#allocation3], 0
    %s9 = scalar_lea.sflag [#allocation3], 1
    %10 = vsyncpa %s9, 0
    loop: start=0, step=1, limit=6
    $region2: #{tpu_custom_call.1} parent=1 // loop_pre_header
      _
    $region3: #{tpu_custom_call.1} parent=1 // loop_header
      %s12 = sphi 0, %s16
      %p13 = scmp.ge.s32.totalorder %s12, 6
      %s22 = sphi 0, %s24
      %s25 = sphi 0, %s22
      %s26 = sphi 0, %s25
      %s42 = sphi 0, %s26
      %s46 = sphi 0, %s46
      %s48 = sphi 0, %s46
      %s49 = sphi 0, %s48
      %s63 = sphi 0, %s49
      %s67 = sphi 0, %s67
      %s69 = sphi 0, %s67
      %s70 = sphi 0, %s69
      %s84 = sphi 0, %s70
      %s90 = sphi 0, %s92
      %s93 = sphi 0, %s90
      %s94 = sphi 0, %s93
      %s110 = sphi 0, %s94
    $region4: #{tpu_custom_call.1} parent=1 // loop_header_branch
      %15 = sbr.rel (%p13) target = $region8
    $region5: #{tpu_custom_call.1} parent=1 // loop_body
      %s17 = ssub.s32 %s12, 1
      %s18 = ssub.s32 %s12, 2
      %s19 = sadd.s32 %s12, 1
      %s20 = ssub.s32 %s12, %s19
      %p21 = scmp.eq.s32.totalorder %s20, 0
      %s23 = sadd.s32 %s22, 1
      %s24 = scalar_select %p21, %s22, %s23
      %p27 = pneg %p21
      %p28 = scmp.eq.s32.totalorder %s12, 3
      %p29 = por %p27, %p28
      %p30 = scmp.ne.s32.totalorder %s22, %s25
      %p31 = scmp.eq.s32.totalorder %s12, 0
      %p32 = por %p30, %p31
      %p33 = scmp.ne.s32.totalorder %s22, %s25
      %p34 = scmp.eq.s32.totalorder %s17, 3
      %p35 = por %p33, %p34
      %p36 = scmp.ne.s32.totalorder %s25, %s26
      %p37 = scmp.eq.s32.totalorder %s17, 0
      %p38 = por %p36, %p37
      %p39 = scmp.ne.s32.totalorder %s25, %s26
      %p40 = scmp.eq.s32.totalorder %s18, 3
      %p41 = por %p39, %p40
      %p43 = scmp.ne.s32.totalorder %s26, %s42
      %p44 = scmp.eq.s32.totalorder %s18, 0
      %p45 = por %p43, %p44
      %s47 = sadd.s32 %s46, 1
      %p50 = scmp.eq.s32.totalorder %s12, 3
      %p51 = scmp.ne.s32.totalorder %s46, %s48
      %p52 = scmp.eq.s32.totalorder %s12, 0
      %p53 = por %p51, %p52
      %p54 = scmp.ne.s32.totalorder %s46, %s48
      %p55 = scmp.eq.s32.totalorder %s17, 3
      %p56 = por %p54, %p55
      %p57 = scmp.ne.s32.totalorder %s48, %s49
      %p58 = scmp.eq.s32.totalorder %s17, 0
      %p59 = por %p57, %p58
      %p60 = scmp.ne.s32.totalorder %s48, %s49
      %p61 = scmp.eq.s32.totalorder %s18, 3
      %p62 = por %p60, %p61
      %p64 = scmp.ne.s32.totalorder %s49, %s63
      %p65 = scmp.eq.s32.totalorder %s18, 0
      %p66 = por %p64, %p65
      %s68 = sadd.s32 %s67, 1
      %p71 = scmp.eq.s32.totalorder %s12, 3
      %p72 = scmp.ne.s32.totalorder %s67, %s69
      %p73 = scmp.eq.s32.totalorder %s12, 0
      %p74 = por %p72, %p73
      %p75 = scmp.ne.s32.totalorder %s67, %s69
      %p76 = scmp.eq.s32.totalorder %s17, 3
      %p77 = por %p75, %p76
      %p78 = scmp.ne.s32.totalorder %s69, %s70
      %p79 = scmp.eq.s32.totalorder %s17, 0
      %p80 = por %p78, %p79
      %p81 = scmp.ne.s32.totalorder %s69, %s70
      %p82 = scmp.eq.s32.totalorder %s18, 3
      %p83 = por %p81, %p82
      %p85 = scmp.ne.s32.totalorder %s70, %s84
      %p86 = scmp.eq.s32.totalorder %s18, 0
      %p87 = por %p85, %p86
      %s88 = ssub.s32 %s12, %s19
      %p89 = scmp.eq.s32.totalorder %s88, 0
      %s91 = sadd.s32 %s90, 1
      %s92 = scalar_select %p89, %s90, %s91
      %p95 = pneg %p89
      %p96 = scmp.eq.s32.totalorder %s12, 3
      %p97 = por %p95, %p96
      %p98 = scmp.ne.s32.totalorder %s90, %s93
      %p99 = scmp.eq.s32.totalorder %s12, 0
      %p100 = por %p98, %p99
      %p101 = scmp.ne.s32.totalorder %s90, %s93
      %p102 = scmp.eq.s32.totalorder %s17, 3
      %p103 = por %p101, %p102
      %p104 = scmp.ne.s32.totalorder %s93, %s94
      %p105 = scmp.eq.s32.totalorder %s17, 0
      %p106 = por %p104, %p105
      %p107 = scmp.ne.s32.totalorder %s93, %s94
      %p108 = scmp.eq.s32.totalorder %s18, 3
      %p109 = por %p107, %p108
      %p111 = scmp.ne.s32.totalorder %s94, %s110
      %p112 = scmp.eq.s32.totalorder %s18, 0
      %p113 = por %p111, %p112
      %p114 = scmp.le.s32.totalorder 1, %s12
      %p115 = scmp.lt.s32.totalorder %s12, 5
      %p116 = pnand %p114, %p115
      %p117 = pneg %p116
      // Predicated region
      $region9: #{tpu_custom_call.1} parent=5 // pred_check
        _
      $region10: #{tpu_custom_call.1} parent=5 // pred_check_branch
        %119 = sbr.rel (%p116) target = $region12
      $region11: #{tpu_custom_call.1} parent=5 // pred_region
        %s120 = ssub.s32 %s12, 1
        // Predicated region
        $region13: #{tpu_custom_call.1} parent=11 // pred_check
          %p121 = pneg %p59
        $region14: #{tpu_custom_call.1} parent=11 // pred_check_branch
          %123 = sbr.rel (%p121) target = $region16
        $region15: #{tpu_custom_call.1} parent=11 // pred_region
          _
        $region16: #{tpu_custom_call.1} parent=11 // pred_fallthru
          _
        // Predicated region
        $region17: #{tpu_custom_call.1} parent=11 // pred_check
          %p124 = pneg %p80
        $region18: #{tpu_custom_call.1} parent=11 // pred_check_branch
          %126 = sbr.rel (%p124) target = $region20
        $region19: #{tpu_custom_call.1} parent=11 // pred_region
          _
        $region20: #{tpu_custom_call.1} parent=11 // pred_fallthru
          _
      $region12: #{tpu_custom_call.1} parent=5 // pred_fallthru
        _
      %p127 = scmp.lt.s32.totalorder %s12, 4
      // Predicated region
      $region21: #{tpu_custom_call.1} parent=5 // pred_check
        %p128 = pneg %p127
      $region22: #{tpu_custom_call.1} parent=5 // pred_check_branch
        %130 = sbr.rel (%p128) target = $region24
      $region23: #{tpu_custom_call.1} parent=5 // pred_region
        // Predicated region
        $region25: #{tpu_custom_call.1} parent=23 // pred_check
          %p131 = pneg %p32
        $region26: #{tpu_custom_call.1} parent=23 // pred_check_branch
          %133 = sbr.rel (%p131) target = $region28
        $region27: #{tpu_custom_call.1} parent=23 // pred_region
          %s134 = smul.u32 64, %s12
          %p135 = scmp.lt.s32.totalorder %s134, 255
          %s136 = scalar_select %p135, %s134, 255
          %s137 = smul.addr %s136, 8
          %s138 = scalar_lea.vmem %s0, %s137
          %s139 = smul.u32 64, %s12
        $region28: #{tpu_custom_call.1} parent=23 // pred_fallthru
          _
      $region24: #{tpu_custom_call.1} parent=5 // pred_fallthru
        _
      %p140 = scmp.le.s32.totalorder 1, %s12
      %p141 = scmp.lt.s32.totalorder %s12, 5
      %p142 = pnand %p140, %p141
      %p143 = pneg %p142
      // Predicated region
      $region29: #{tpu_custom_call.1} parent=5 // pred_check
        _
      $region30: #{tpu_custom_call.1} parent=5 // pred_check_branch
        %145 = sbr.rel (%p142) target = $region32
      $region31: #{tpu_custom_call.1} parent=5 // pred_region
        %s146 = ssub.s32 %s12, 1
        %s147 = smul.u32 64, %s17
        %p148 = scmp.lt.s32.totalorder %s147, 255
        %s149 = scalar_select %p148, %s147, 255
        %s150 = smul.addr %s149, 8
        %s151 = scalar_lea.vmem %s0, %s150
        %p152 = pneg %p38
        %p153 = pneg %p35
        %p154 = pneg %p59
        %p155 = pneg %p56
        %p156 = pneg %p80
        %p157 = pneg %p77
        %p158 = pneg %p106
        %p159 = pneg %p103
        %s160 = sand.u32 %s93, 1
        %s161 = scalar_lea.sflag [#allocation3], %s160
        %s162 = sand.u32 %s93, 1
        %s163 = smul.addr %s162, 512
        %s164 = scalar_lea.vmem [#allocation2], %s163
        %s165 = smul.u32 64, %s17
        %p166 = scmp.lt.s32.totalorder %s165, 255
        %s167 = scalar_select %p166, %s165, 255
        %s168 = smul.addr %s167, 8
        %s169 = scalar_lea.vmem %s0, %s168
        %s170 = smul.u32 64, %s17
        %s171 = smul.u32 64, %s17
        %v172 = vld [vmem:[%s169] sm:$0xff]
        %v173 = vld [vmem:[%s169 + $0x8] sm:$0xff]
        %v174 = vld [vmem:[%s169 + $0x10] sm:$0xff]
        %v175 = vld [vmem:[%s169 + $0x18] sm:$0xff]
        %v176 = vld [vmem:[%s169 + $0x20] sm:$0xff]
        %v177 = vld [vmem:[%s169 + $0x28] sm:$0xff]
        %v178 = vld [vmem:[%s169 + $0x30] sm:$0xff]
        %v179 = vld [vmem:[%s169 + $0x38] sm:$0xff]
        %v180 = vld [vmem:[%s169 + $0x40] sm:$0xff]
        %v181 = vld [vmem:[%s169 + $0x48] sm:$0xff]
        %v182 = vld [vmem:[%s169 + $0x50] sm:$0xff]
        %v183 = vld [vmem:[%s169 + $0x58] sm:$0xff]
        %v184 = vld [vmem:[%s169 + $0x60] sm:$0xff]
        %v185 = vld [vmem:[%s169 + $0x68] sm:$0xff]
        %v186 = vld [vmem:[%s169 + $0x70] sm:$0xff]
        %v187 = vld [vmem:[%s169 + $0x78] sm:$0xff]
        %v188 = vld [vmem:[%s169 + $0x80] sm:$0xff]
        %v189 = vld [vmem:[%s169 + $0x88] sm:$0xff]
        %v190 = vld [vmem:[%s169 + $0x90] sm:$0xff]
        %v191 = vld [vmem:[%s169 + $0x98] sm:$0xff]
        %v192 = vld [vmem:[%s169 + $0xa0] sm:$0xff]
        %v193 = vld [vmem:[%s169 + $0xa8] sm:$0xff]
        %v194 = vld [vmem:[%s169 + $0xb0] sm:$0xff]
        %v195 = vld [vmem:[%s169 + $0xb8] sm:$0xff]
        %v196 = vld [vmem:[%s169 + $0xc0] sm:$0xff]
        %v197 = vld [vmem:[%s169 + $0xc8] sm:$0xff]
        %v198 = vld [vmem:[%s169 + $0xd0] sm:$0xff]
        %v199 = vld [vmem:[%s169 + $0xd8] sm:$0xff]
        %v200 = vld [vmem:[%s169 + $0xe0] sm:$0xff]
        %v201 = vld [vmem:[%s169 + $0xe8] sm:$0xff]
        %v202 = vld [vmem:[%s169 + $0xf0] sm:$0xff]
        %v203 = vld [vmem:[%s169 + $0xf8] sm:$0xff]
        %v204 = vld [vmem:[%s169 + $0x100] sm:$0xff]
        %v205 = vld [vmem:[%s169 + $0x108] sm:$0xff]
        %v206 = vld [vmem:[%s169 + $0x110] sm:$0xff]
        %v207 = vld [vmem:[%s169 + $0x118] sm:$0xff]
        %v208 = vld [vmem:[%s169 + $0x120] sm:$0xff]
        %v209 = vld [vmem:[%s169 + $0x128] sm:$0xff]
        %v210 = vld [vmem:[%s169 + $0x130] sm:$0xff]
        %v211 = vld [vmem:[%s169 + $0x138] sm:$0xff]
        %v212 = vld [vmem:[%s169 + $0x140] sm:$0xff]
        %v213 = vld [vmem:[%s169 + $0x148] sm:$0xff]
        %v214 = vld [vmem:[%s169 + $0x150] sm:$0xff]
        %v215 = vld [vmem:[%s169 + $0x158] sm:$0xff]
        %v216 = vld [vmem:[%s169 + $0x160] sm:$0xff]
        %v217 = vld [vmem:[%s169 + $0x168] sm:$0xff]
        %v218 = vld [vmem:[%s169 + $0x170] sm:$0xff]
        %v219 = vld [vmem:[%s169 + $0x178] sm:$0xff]
        %v220 = vld [vmem:[%s169 + $0x180] sm:$0xff]
        %v221 = vld [vmem:[%s169 + $0x188] sm:$0xff]
        %v222 = vld [vmem:[%s169 + $0x190] sm:$0xff]
        %v223 = vld [vmem:[%s169 + $0x198] sm:$0xff]
        %v224 = vld [vmem:[%s169 + $0x1a0] sm:$0xff]
        %v225 = vld [vmem:[%s169 + $0x1a8] sm:$0xff]
        %v226 = vld [vmem:[%s169 + $0x1b0] sm:$0xff]
        %v227 = vld [vmem:[%s169 + $0x1b8] sm:$0xff]
        %v228 = vld [vmem:[%s169 + $0x1c0] sm:$0xff]
        %v229 = vld [vmem:[%s169 + $0x1c8] sm:$0xff]
        %v230 = vld [vmem:[%s169 + $0x1d0] sm:$0xff]
        %v231 = vld [vmem:[%s169 + $0x1d8] sm:$0xff]
        %v232 = vld [vmem:[%s169 + $0x1e0] sm:$0xff]
        %v233 = vld [vmem:[%s169 + $0x1e8] sm:$0xff]
        %v234 = vld [vmem:[%s169 + $0x1f0] sm:$0xff]
        %v235 = vld [vmem:[%s169 + $0x1f8] sm:$0xff]
        %v236 = vld [vmem:[%s1] sm:$0xff]
        %v237 = vld [vmem:[%s1 + $0x8] sm:$0xff]
        %v238 = vld [vmem:[%s1 + $0x10] sm:$0xff]
        %v239 = vld [vmem:[%s1 + $0x18] sm:$0xff]
        %v240 = vld [vmem:[%s1 + $0x20] sm:$0xf]
        %v241 = vld [vmem:[%s2] sm:$0x1]
        %v243 = vperm.slane %v241, 0
        %vm245 = vcmask 293888
        %v247 = vsel %vm245, %v172, 0
        %v250 = vsel %vm245, %v173, 0
        %v253 = vsel %vm245, %v174, 0
        %v256 = vsel %vm245, %v175, 0
        %v259 = vsel %vm245, %v176, 0
        %v262 = vsel %vm245, %v177, 0
        %v265 = vsel %vm245, %v178, 0
        %v268 = vsel %vm245, %v179, 0
        %v271 = vsel %vm245, %v180, 0
        %v274 = vsel %vm245, %v181, 0
        %v277 = vsel %vm245, %v182, 0
        %v280 = vsel %vm245, %v183, 0
        %v283 = vsel %vm245, %v184, 0
        %v286 = vsel %vm245, %v185, 0
        %v289 = vsel %vm245, %v186, 0
        %v292 = vsel %vm245, %v187, 0
        %v295 = vsel %vm245, %v188, 0
        %v298 = vsel %vm245, %v189, 0
        %v301 = vsel %vm245, %v190, 0
        %v304 = vsel %vm245, %v191, 0
        %v307 = vsel %vm245, %v192, 0
        %v310 = vsel %vm245, %v193, 0
        %v313 = vsel %vm245, %v194, 0
        %v316 = vsel %vm245, %v195, 0
        %v319 = vsel %vm245, %v196, 0
        %v322 = vsel %vm245, %v197, 0
        %v325 = vsel %vm245, %v198, 0
        %v328 = vsel %vm245, %v199, 0
        %v331 = vsel %vm245, %v200, 0
        %v334 = vsel %vm245, %v201, 0
        %v337 = vsel %vm245, %v202, 0
        %v340 = vsel %vm245, %v203, 0
        %v343 = vsel %vm245, %v204, 0
        %v346 = vsel %vm245, %v205, 0
        %v349 = vsel %vm245, %v206, 0
        %v352 = vsel %vm245, %v207, 0
        %v355 = vsel %vm245, %v208, 0
        %v358 = vsel %vm245, %v209, 0
        %v361 = vsel %vm245, %v210, 0
        %v364 = vsel %vm245, %v211, 0
        %v367 = vsel %vm245, %v212, 0
        %v370 = vsel %vm245, %v213, 0
        %v373 = vsel %vm245, %v214, 0
        %v376 = vsel %vm245, %v215, 0
        %v379 = vsel %vm245, %v216, 0
        %v382 = vsel %vm245, %v217, 0
        %v385 = vsel %vm245, %v218, 0
        %v388 = vsel %vm245, %v219, 0
        %v391 = vsel %vm245, %v220, 0
        %v394 = vsel %vm245, %v221, 0
        %v397 = vsel %vm245, %v222, 0
        %v400 = vsel %vm245, %v223, 0
        %v403 = vsel %vm245, %v224, 0
        %v406 = vsel %vm245, %v225, 0
        %v409 = vsel %vm245, %v226, 0
        %v412 = vsel %vm245, %v227, 0
        %v415 = vsel %vm245, %v228, 0
        %v418 = vsel %vm245, %v229, 0
        %v421 = vsel %vm245, %v230, 0
        %v424 = vsel %vm245, %v231, 0
        %v427 = vsel %vm245, %v232, 0
        %v430 = vsel %vm245, %v233, 0
        %v433 = vsel %vm245, %v234, 0
        %v436 = vsel %vm245, %v235, 0
        %vm438 = vcmask 1043456
        %v440 = vsel %vm438, %v240, 0
        %442 = vmatpush.msra.mxu0 0.0
        %443 = vmatpush.msra.mxu0 0.0
        %444 = vmatpush.msra.mxu0 0.0
        %445 = vmatpush.msra.mxu0 0.0
        %446 = vmatpush.msra.mxu0 0.0
        %447 = vmatpush.msra.mxu0 0.0
        %448 = vmatpush.msra.mxu0 0.0
        %449 = vmatpush.msra.mxu0 0.0
        %450 = vmatpush.msra.mxu0 0.0
        %451 = vmatpush.msra.mxu0 0.0
        %452 = vmatpush.msra.mxu0 0.0
        %453 = vmatpush.msra.mxu0 %v440
        %454 = vmatpush.msra.mxu0 %v239
        %455 = vmatpush.msra.mxu0 %v238
        %456 = vmatpush.msra.mxu0 %v237
        %457 = vmatpush.msra.mxu0 %v236
        %458 = vmatmul.f32.gmra.mxu0 %v247
        %v459 = vpop.f32.mrf.mxu0
        %v460 = vadd.f32 %v243, %v459
        %461 = vmatmul.f32.gmra.mxu0 %v250
        %v462 = vpop.f32.mrf.mxu0
        %v463 = vadd.f32 %v243, %v462
        %464 = vmatmul.f32.gmra.mxu0 %v253
        %v465 = vpop.f32.mrf.mxu0
        %v466 = vadd.f32 %v243, %v465
        %467 = vmatmul.f32.gmra.mxu0 %v256
        %v468 = vpop.f32.mrf.mxu0
        %v469 = vadd.f32 %v243, %v468
        %470 = vmatmul.f32.gmra.mxu0 %v259
        %v471 = vpop.f32.mrf.mxu0
        %v472 = vadd.f32 %v243, %v471
        %473 = vmatmul.f32.gmra.mxu0 %v262
        %v474 = vpop.f32.mrf.mxu0
        %v475 = vadd.f32 %v243, %v474
        %476 = vmatmul.f32.gmra.mxu0 %v265
        %v477 = vpop.f32.mrf.mxu0
        %v478 = vadd.f32 %v243, %v477
        %479 = vmatmul.f32.gmra.mxu0 %v268
        %v480 = vpop.f32.mrf.mxu0
        %v481 = vadd.f32 %v243, %v480
        %482 = vmatmul.f32.gmra.mxu0 %v271
        %v483 = vpop.f32.mrf.mxu0
        %v484 = vadd.f32 %v243, %v483
        %485 = vmatmul.f32.gmra.mxu0 %v274
        %v486 = vpop.f32.mrf.mxu0
        %v487 = vadd.f32 %v243, %v486
        %488 = vmatmul.f32.gmra.mxu0 %v277
        %v489 = vpop.f32.mrf.mxu0
        %v490 = vadd.f32 %v243, %v489
        %491 = vmatmul.f32.gmra.mxu0 %v280
        %v492 = vpop.f32.mrf.mxu0
        %v493 = vadd.f32 %v243, %v492
        %494 = vmatmul.f32.gmra.mxu0 %v283
        %v495 = vpop.f32.mrf.mxu0
        %v496 = vadd.f32 %v243, %v495
        %497 = vmatmul.f32.gmra.mxu0 %v286
        %v498 = vpop.f32.mrf.mxu0
        %v499 = vadd.f32 %v243, %v498
        %500 = vmatmul.f32.gmra.mxu0 %v289
        %v501 = vpop.f32.mrf.mxu0
        %v502 = vadd.f32 %v243, %v501
        %503 = vmatmul.f32.gmra.mxu0 %v292
        %v504 = vpop.f32.mrf.mxu0
        %v505 = vadd.f32 %v243, %v504
        %506 = vmatmul.f32.gmra.mxu0 %v295
        %v507 = vpop.f32.mrf.mxu0
        %v508 = vadd.f32 %v243, %v507
        %509 = vmatmul.f32.gmra.mxu0 %v298
        %v510 = vpop.f32.mrf.mxu0
        %v511 = vadd.f32 %v243, %v510
        %512 = vmatmul.f32.gmra.mxu0 %v301
        %v513 = vpop.f32.mrf.mxu0
        %v514 = vadd.f32 %v243, %v513
        %515 = vmatmul.f32.gmra.mxu0 %v304
        %v516 = vpop.f32.mrf.mxu0
        %v517 = vadd.f32 %v243, %v516
        %518 = vmatmul.f32.gmra.mxu0 %v307
        %v519 = vpop.f32.mrf.mxu0
        %v520 = vadd.f32 %v243, %v519
        %521 = vmatmul.f32.gmra.mxu0 %v310
        %v522 = vpop.f32.mrf.mxu0
        %v523 = vadd.f32 %v243, %v522
        %524 = vmatmul.f32.gmra.mxu0 %v313
        %v525 = vpop.f32.mrf.mxu0
        %v526 = vadd.f32 %v243, %v525
        %527 = vmatmul.f32.gmra.mxu0 %v316
        %v528 = vpop.f32.mrf.mxu0
        %v529 = vadd.f32 %v243, %v528
        %530 = vmatmul.f32.gmra.mxu0 %v319
        %v531 = vpop.f32.mrf.mxu0
        %v532 = vadd.f32 %v243, %v531
        %533 = vmatmul.f32.gmra.mxu0 %v322
        %v534 = vpop.f32.mrf.mxu0
        %v535 = vadd.f32 %v243, %v534
        %536 = vmatmul.f32.gmra.mxu0 %v325
        %v537 = vpop.f32.mrf.mxu0
        %v538 = vadd.f32 %v243, %v537
        %539 = vmatmul.f32.gmra.mxu0 %v328
        %v540 = vpop.f32.mrf.mxu0
        %v541 = vadd.f32 %v243, %v540
        %542 = vmatmul.f32.gmra.mxu0 %v331
        %v543 = vpop.f32.mrf.mxu0
        %v544 = vadd.f32 %v243, %v543
        %545 = vmatmul.f32.gmra.mxu0 %v334
        %v546 = vpop.f32.mrf.mxu0
        %v547 = vadd.f32 %v243, %v546
        %548 = vmatmul.f32.gmra.mxu0 %v337
        %v549 = vpop.f32.mrf.mxu0
        %v550 = vadd.f32 %v243, %v549
        %551 = vmatmul.f32.gmra.mxu0 %v340
        %v552 = vpop.f32.mrf.mxu0
        %v553 = vadd.f32 %v243, %v552
        %554 = vmatmul.f32.gmra.mxu0 %v343
        %v555 = vpop.f32.mrf.mxu0
        %v556 = vadd.f32 %v243, %v555
        %557 = vmatmul.f32.gmra.mxu0 %v346
        %v558 = vpop.f32.mrf.mxu0
        %v559 = vadd.f32 %v243, %v558
        %560 = vmatmul.f32.gmra.mxu0 %v349
        %v561 = vpop.f32.mrf.mxu0
        %v562 = vadd.f32 %v243, %v561
        %563 = vmatmul.f32.gmra.mxu0 %v352
        %v564 = vpop.f32.mrf.mxu0
        %v565 = vadd.f32 %v243, %v564
        %566 = vmatmul.f32.gmra.mxu0 %v355
        %v567 = vpop.f32.mrf.mxu0
        %v568 = vadd.f32 %v243, %v567
        %569 = vmatmul.f32.gmra.mxu0 %v358
        %v570 = vpop.f32.mrf.mxu0
        %v571 = vadd.f32 %v243, %v570
        %572 = vmatmul.f32.gmra.mxu0 %v361
        %v573 = vpop.f32.mrf.mxu0
        %v574 = vadd.f32 %v243, %v573
        %575 = vmatmul.f32.gmra.mxu0 %v364
        %v576 = vpop.f32.mrf.mxu0
        %v577 = vadd.f32 %v243, %v576
        %578 = vmatmul.f32.gmra.mxu0 %v367
        %v579 = vpop.f32.mrf.mxu0
        %v580 = vadd.f32 %v243, %v579
        %581 = vmatmul.f32.gmra.mxu0 %v370
        %v582 = vpop.f32.mrf.mxu0
        %v583 = vadd.f32 %v243, %v582
        %584 = vmatmul.f32.gmra.mxu0 %v373
        %v585 = vpop.f32.mrf.mxu0
        %v586 = vadd.f32 %v243, %v585
        %587 = vmatmul.f32.gmra.mxu0 %v376
        %v588 = vpop.f32.mrf.mxu0
        %v589 = vadd.f32 %v243, %v588
        %590 = vmatmul.f32.gmra.mxu0 %v379
        %v591 = vpop.f32.mrf.mxu0
        %v592 = vadd.f32 %v243, %v591
        %593 = vmatmul.f32.gmra.mxu0 %v382
        %v594 = vpop.f32.mrf.mxu0
        %v595 = vadd.f32 %v243, %v594
        %596 = vmatmul.f32.gmra.mxu0 %v385
        %v597 = vpop.f32.mrf.mxu0
        %v598 = vadd.f32 %v243, %v597
        %599 = vmatmul.f32.gmra.mxu0 %v388
        %v600 = vpop.f32.mrf.mxu0
        %v601 = vadd.f32 %v243, %v600
        %602 = vmatmul.f32.gmra.mxu0 %v391
        %v603 = vpop.f32.mrf.mxu0
        %v604 = vadd.f32 %v243, %v603
        %605 = vmatmul.f32.gmra.mxu0 %v394
        %v606 = vpop.f32.mrf.mxu0
        %v607 = vadd.f32 %v243, %v606
        %608 = vmatmul.f32.gmra.mxu0 %v397
        %v609 = vpop.f32.mrf.mxu0
        %v610 = vadd.f32 %v243, %v609
        %611 = vmatmul.f32.gmra.mxu0 %v400
        %v612 = vpop.f32.mrf.mxu0
        %v613 = vadd.f32 %v243, %v612
        %614 = vmatmul.f32.gmra.mxu0 %v403
        %v615 = vpop.f32.mrf.mxu0
        %v616 = vadd.f32 %v243, %v615
        %617 = vmatmul.f32.gmra.mxu0 %v406
        %v618 = vpop.f32.mrf.mxu0
        %v619 = vadd.f32 %v243, %v618
        %620 = vmatmul.f32.gmra.mxu0 %v409
        %v621 = vpop.f32.mrf.mxu0
        %v622 = vadd.f32 %v243, %v621
        %623 = vmatmul.f32.gmra.mxu0 %v412
        %v624 = vpop.f32.mrf.mxu0
        %v625 = vadd.f32 %v243, %v624
        %626 = vmatmul.f32.gmra.mxu0 %v415
        %v627 = vpop.f32.mrf.mxu0
        %v628 = vadd.f32 %v243, %v627
        %629 = vmatmul.f32.gmra.mxu0 %v418
        %v630 = vpop.f32.mrf.mxu0
        %v631 = vadd.f32 %v243, %v630
        %632 = vmatmul.f32.gmra.mxu0 %v421
        %v633 = vpop.f32.mrf.mxu0
        %v634 = vadd.f32 %v243, %v633
        %635 = vmatmul.f32.gmra.mxu0 %v424
        %v636 = vpop.f32.mrf.mxu0
        %v637 = vadd.f32 %v243, %v636
        %638 = vmatmul.f32.gmra.mxu0 %v427
        %v639 = vpop.f32.mrf.mxu0
        %v640 = vadd.f32 %v243, %v639
        %641 = vmatmul.f32.gmra.mxu0 %v430
        %v642 = vpop.f32.mrf.mxu0
        %v643 = vadd.f32 %v243, %v642
        %644 = vmatmul.f32.gmra.mxu0 %v433
        %v645 = vpop.f32.mrf.mxu0
        %v646 = vadd.f32 %v243, %v645
        %647 = vmatmul.f32.gmra.mxu0 %v436
        %v648 = vpop.f32.mrf.mxu0
        %v649 = vadd.f32 %v243, %v648
        %650 = vdwg.mxu0
        %v651 = vmax.f32 %v460, 0.0
        %v652 = vmax.f32 %v463, 0.0
        %v653 = vmax.f32 %v466, 0.0
        %v654 = vmax.f32 %v469, 0.0
        %v655 = vmax.f32 %v472, 0.0
        %v656 = vmax.f32 %v475, 0.0
        %v657 = vmax.f32 %v478, 0.0
        %v658 = vmax.f32 %v481, 0.0
        %v659 = vmax.f32 %v484, 0.0
        %v660 = vmax.f32 %v487, 0.0
        %v661 = vmax.f32 %v490, 0.0
        %v662 = vmax.f32 %v493, 0.0
        %v663 = vmax.f32 %v496, 0.0
        %v664 = vmax.f32 %v499, 0.0
        %v665 = vmax.f32 %v502, 0.0
        %v666 = vmax.f32 %v505, 0.0
        %v667 = vmax.f32 %v508, 0.0
        %v668 = vmax.f32 %v511, 0.0
        %v669 = vmax.f32 %v514, 0.0
        %v670 = vmax.f32 %v517, 0.0
        %v671 = vmax.f32 %v520, 0.0
        %v672 = vmax.f32 %v523, 0.0
        %v673 = vmax.f32 %v526, 0.0
        %v674 = vmax.f32 %v529, 0.0
        %v675 = vmax.f32 %v532, 0.0
        %v676 = vmax.f32 %v535, 0.0
        %v677 = vmax.f32 %v538, 0.0
        %v678 = vmax.f32 %v541, 0.0
        %v679 = vmax.f32 %v544, 0.0
        %v680 = vmax.f32 %v547, 0.0
        %v681 = vmax.f32 %v550, 0.0
        %v682 = vmax.f32 %v553, 0.0
        %v683 = vmax.f32 %v556, 0.0
        %v684 = vmax.f32 %v559, 0.0
        %v685 = vmax.f32 %v562, 0.0
        %v686 = vmax.f32 %v565, 0.0
        %v687 = vmax.f32 %v568, 0.0
        %v688 = vmax.f32 %v571, 0.0
        %v689 = vmax.f32 %v574, 0.0
        %v690 = vmax.f32 %v577, 0.0
        %v691 = vmax.f32 %v580, 0.0
        %v692 = vmax.f32 %v583, 0.0
        %v693 = vmax.f32 %v586, 0.0
        %v694 = vmax.f32 %v589, 0.0
        %v695 = vmax.f32 %v592, 0.0
        %v696 = vmax.f32 %v595, 0.0
        %v697 = vmax.f32 %v598, 0.0
        %v698 = vmax.f32 %v601, 0.0
        %v699 = vmax.f32 %v604, 0.0
        %v700 = vmax.f32 %v607, 0.0
        %v701 = vmax.f32 %v610, 0.0
        %v702 = vmax.f32 %v613, 0.0
        %v703 = vmax.f32 %v616, 0.0
        %v704 = vmax.f32 %v619, 0.0
        %v705 = vmax.f32 %v622, 0.0
        %v706 = vmax.f32 %v625, 0.0
        %v707 = vmax.f32 %v628, 0.0
        %v708 = vmax.f32 %v631, 0.0
        %v709 = vmax.f32 %v634, 0.0
        %v710 = vmax.f32 %v637, 0.0
        %v711 = vmax.f32 %v640, 0.0
        %v712 = vmax.f32 %v643, 0.0
        %v713 = vmax.f32 %v646, 0.0
        %v714 = vmax.f32 %v649, 0.0
        %715 = vst [vmem:[%s164] sm:$0xff] %v651
        %716 = vst [vmem:[%s164 + $0x8] sm:$0xff] %v652
        %717 = vst [vmem:[%s164 + $0x10] sm:$0xff] %v653
        %718 = vst [vmem:[%s164 + $0x18] sm:$0xff] %v654
        %719 = vst [vmem:[%s164 + $0x20] sm:$0xff] %v655
        %720 = vst [vmem:[%s164 + $0x28] sm:$0xff] %v656
        %721 = vst [vmem:[%s164 + $0x30] sm:$0xff] %v657
        %722 = vst [vmem:[%s164 + $0x38] sm:$0xff] %v658
        %723 = vst [vmem:[%s164 + $0x40] sm:$0xff] %v659
        %724 = vst [vmem:[%s164 + $0x48] sm:$0xff] %v660
        %725 = vst [vmem:[%s164 + $0x50] sm:$0xff] %v661
        %726 = vst [vmem:[%s164 + $0x58] sm:$0xff] %v662
        %727 = vst [vmem:[%s164 + $0x60] sm:$0xff] %v663
        %728 = vst [vmem:[%s164 + $0x68] sm:$0xff] %v664
        %729 = vst [vmem:[%s164 + $0x70] sm:$0xff] %v665
        %730 = vst [vmem:[%s164 + $0x78] sm:$0xff] %v666
        %731 = vst [vmem:[%s164 + $0x80] sm:$0xff] %v667
        %732 = vst [vmem:[%s164 + $0x88] sm:$0xff] %v668
        %733 = vst [vmem:[%s164 + $0x90] sm:$0xff] %v669
        %734 = vst [vmem:[%s164 + $0x98] sm:$0xff] %v670
        %735 = vst [vmem:[%s164 + $0xa0] sm:$0xff] %v671
        %736 = vst [vmem:[%s164 + $0xa8] sm:$0xff] %v672
        %737 = vst [vmem:[%s164 + $0xb0] sm:$0xff] %v673
        %738 = vst [vmem:[%s164 + $0xb8] sm:$0xff] %v674
        %739 = vst [vmem:[%s164 + $0xc0] sm:$0xff] %v675
        %740 = vst [vmem:[%s164 + $0xc8] sm:$0xff] %v676
        %741 = vst [vmem:[%s164 + $0xd0] sm:$0xff] %v677
        %742 = vst [vmem:[%s164 + $0xd8] sm:$0xff] %v678
        %743 = vst [vmem:[%s164 + $0xe0] sm:$0xff] %v679
        %744 = vst [vmem:[%s164 + $0xe8] sm:$0xff] %v680
        %745 = vst [vmem:[%s164 + $0xf0] sm:$0xff] %v681
        %746 = vst [vmem:[%s164 + $0xf8] sm:$0xff] %v682
        %747 = vst [vmem:[%s164 + $0x100] sm:$0xff] %v683
        %748 = vst [vmem:[%s164 + $0x108] sm:$0xff] %v684
        %749 = vst [vmem:[%s164 + $0x110] sm:$0xff] %v685
        %750 = vst [vmem:[%s164 + $0x118] sm:$0xff] %v686
        %751 = vst [vmem:[%s164 + $0x120] sm:$0xff] %v687
        %752 = vst [vmem:[%s164 + $0x128] sm:$0xff] %v688
        %753 = vst [vmem:[%s164 + $0x130] sm:$0xff] %v689
        %754 = vst [vmem:[%s164 + $0x138] sm:$0xff] %v690
        %755 = vst [vmem:[%s164 + $0x140] sm:$0xff] %v691
        %756 = vst [vmem:[%s164 + $0x148] sm:$0xff] %v692
        %757 = vst [vmem:[%s164 + $0x150] sm:$0xff] %v693
        %758 = vst [vmem:[%s164 + $0x158] sm:$0xff] %v694
        %759 = vst [vmem:[%s164 + $0x160] sm:$0xff] %v695
        %760 = vst [vmem:[%s164 + $0x168] sm:$0xff] %v696
        %761 = vst [vmem:[%s164 + $0x170] sm:$0xff] %v697
        %762 = vst [vmem:[%s164 + $0x178] sm:$0xff] %v698
        %763 = vst [vmem:[%s164 + $0x180] sm:$0xff] %v699
        %764 = vst [vmem:[%s164 + $0x188] sm:$0xff] %v700
        %765 = vst [vmem:[%s164 + $0x190] sm:$0xff] %v701
        %766 = vst [vmem:[%s164 + $0x198] sm:$0xff] %v702
        %767 = vst [vmem:[%s164 + $0x1a0] sm:$0xff] %v703
        %768 = vst [vmem:[%s164 + $0x1a8] sm:$0xff] %v704
        %769 = vst [vmem:[%s164 + $0x1b0] sm:$0xff] %v705
        %770 = vst [vmem:[%s164 + $0x1b8] sm:$0xff] %v706
        %771 = vst [vmem:[%s164 + $0x1c0] sm:$0xff] %v707
        %772 = vst [vmem:[%s164 + $0x1c8] sm:$0xff] %v708
        %773 = vst [vmem:[%s164 + $0x1d0] sm:$0xff] %v709
        %774 = vst [vmem:[%s164 + $0x1d8] sm:$0xff] %v710
        %775 = vst [vmem:[%s164 + $0x1e0] sm:$0xff] %v711
        %776 = vst [vmem:[%s164 + $0x1e8] sm:$0xff] %v712
        %777 = vst [vmem:[%s164 + $0x1f0] sm:$0xff] %v713
        %778 = vst [vmem:[%s164 + $0x1f8] sm:$0xff] %v714
        %s779 = sand.u32 %s93, 1
        %s780 = scalar_lea.sflag [#allocation3], %s779
        %s781 = sand.u32 %s93, 1
        %s782 = smul.addr %s781, 512
        %s783 = scalar_lea.vmem [#allocation2], %s782
        // Predicated region
        $region33: #{tpu_custom_call.1} parent=31 // pred_check
          %p784 = pneg %p103
        $region34: #{tpu_custom_call.1} parent=31 // pred_check_branch
          %786 = sbr.rel (%p784) target = $region36
        $region35: #{tpu_custom_call.1} parent=31 // pred_region
          %s787 = smul.u32 64, %s17
          %789 = vsyncadd %s780, 0
          %s790 = smul.addr %s787, 8
          %s791 = scalar_lea.hbm %s3, %s790
          %s792 = sshll.u32 %s783, 4
          %s793 = int_to_ptr.vmem [resolvable:$true] %s792
          %s794 = sshll.u32 %s791, 4
          %s795 = int_to_ptr.hbm [resolvable:$true] %s794
          %800 = dma.vmem_to_hbm [thread:$0]  %s793, 8192, %s795, %s780, 128, 128, 8
        $region36: #{tpu_custom_call.1} parent=31 // pred_fallthru
          _
      $region32: #{tpu_custom_call.1} parent=5 // pred_fallthru
        _
      %p801 = scmp.le.s32.totalorder 2, %s12
      // Predicated region
      $region37: #{tpu_custom_call.1} parent=5 // pred_check
        %p802 = pneg %p801
      $region38: #{tpu_custom_call.1} parent=5 // pred_check_branch
        %804 = sbr.rel (%p802) target = $region40
      $region39: #{tpu_custom_call.1} parent=5 // pred_region
        %s805 = ssub.s32 %s12, 2
        // Predicated region
        $region41: #{tpu_custom_call.1} parent=39 // pred_check
          %p806 = pneg %p109
        $region42: #{tpu_custom_call.1} parent=39 // pred_check_branch
          %808 = sbr.rel (%p806) target = $region44
        $region43: #{tpu_custom_call.1} parent=39 // pred_region
          %s809 = sand.u32 %s94, 1
          %s810 = scalar_lea.sflag [#allocation3], %s809
          %s811 = sand.u32 %s94, 1
          %s812 = smul.addr %s811, 512
          %s813 = scalar_lea.vmem [#allocation2], %s812
          %815 = dma.done %s810, 8192
        $region44: #{tpu_custom_call.1} parent=39 // pred_fallthru
          _
      $region40: #{tpu_custom_call.1} parent=5 // pred_fallthru
        _
    $region6: #{tpu_custom_call.1} parent=1 // loop_footer
      %s16 = sadd.s32 1, %s12
    $region7: #{tpu_custom_call.1} parent=1 // loop_footer_branch
      %11 = sbr.rel target = $region3
    $region8: #{tpu_custom_call.1} parent=1 // loop_exit
      _
    %816 = vsyncpa [#allocation3], 1
    %s817 = scalar_lea.sflag [#allocation3], 1
    %818 = vsyncpa %s817, 1

</llo_original>
